<compile_context>
chip_gen: v7x
topology: tpu7x:2x2x1
jax: 0.10.0
libtpu: 0.0.40
codegen_flags: <defaults>
</compile_context>

<pallas_src>
import jax
import jax.numpy as jnp
from jax.experimental import pallas as pl
from jax.experimental.pallas import tpu as pltpu


# ---------------------------------------------------------------------------
# Kernel (shared by both layouts: keep block always matches x's first two dims)
# ---------------------------------------------------------------------------
def _squeeze_kernel(x_ref, keep_ref, o_ref):
    """x_ref/o_ref: (T0, T1, TD); keep_ref: (T0, T1) in x.dtype (0/1 keep factor)."""
    o_ref[...] = x_ref[...] * keep_ref[...][:, :, None]


# ---------------------------------------------------------------------------
# VMEM capacity / tile sizing
# ---------------------------------------------------------------------------
def _vmem_capacity_bytes() -> int:
    cap = None
    try:
        info = pltpu.get_tpu_info()
        cap = getattr(info, "vmem_capacity_bytes", None)
        ver = str(getattr(info, "chip_version", "") or getattr(info, "version", ""))
        # v7x has 64 MiB per TensorCore; clamp in case the query reports per-chip totals.
        if cap and ("7" in ver) and cap > (64 << 20):
            cap = 64 << 20
    except Exception:
        cap = None
    return int(cap) if cap else 64 * 1024 * 1024  # conservative default (per-TC v7x VMEM)


def _pick_tiles(B, S, D, itemsize, target_bytes, batch_first):
    """Pick (TB, TS, TD) so one x/o block is <= ~target_bytes.

    Block-shape rules honored ((8,128) constraint + dtype packing):
      batch-major:  x (TB,TS,TD), keep (TB,TS):
        TB == B or multiple of the packed-sublane granule (8 f32 / 16 bf16 / 32 int8)
        TS == S or multiple of 128; TD == D or multiple of 128 (>=512 B rows)
      seq-major:    x (TS,TB,TD), keep (TS,TB):
        TS == S or multiple of the packed-sublane granule
        TB == B or multiple of 128 (lane dim of keep); TD as above
    """
    sub_granule = 8 * max(1, 4 // itemsize)      # 8 f32 / 16 bf16 / 32 int8-fp8
    d_floor = max(128, 512 // itemsize)          # keep >=512 B contiguous rows if D tiled
    TB, TS, TD = B, S, D

    def blk(tb, ts, td):
        return tb * ts * td * itemsize

    def shrink(full, granule, other_bytes):
        if full <= granule:
            return full
        t = max(granule, (target_bytes // max(other_bytes, 1)) // granule * granule)
        return min(full, t)

    if batch_first:
        # x is (B, S, D): tile B first (contiguous HBM blocks), then S, then D.
        if blk(TB, TS, TD) > target_bytes:
            TB = shrink(B, sub_granule, S * D * itemsize)
        if blk(TB, TS, TD) > target_bytes:
            TS = shrink(S, 128, TB * D * itemsize)
    else:
        # x is (S, B, D): tile S first (contiguous HBM blocks), then B.
        if blk(TB, TS, TD) > target_bytes:
            TS = shrink(S, sub_granule, B * D * itemsize)
        if blk(TB, TS, TD) > target_bytes:
            TB = shrink(B, 128, TS * D * itemsize)   # lane dim of the (TS,TB) keep block
    if blk(TB, TS, TD) > target_bytes and D > d_floor:
        td = max(d_floor, (target_bytes // max(TB * TS * itemsize, 1)) // 128 * 128)
        TD = min(D, td)
    return int(TB), int(TS), int(TD)


# ---------------------------------------------------------------------------
# Wrapper
# ---------------------------------------------------------------------------
def squeeze_embedding(x, mask, batch_first: bool = True, target_block_bytes=None):
    """Pallas implementation of SqueezeEmbedding.forward.

    Args:
      x:    (B, S, D) if batch_first else (S, B, D), float
      mask: (B, S) bool / {0,1}, True for real tokens (right-padded)
      target_block_bytes: optional per-block size override (testing / tuning)
    Returns:
      array of x's shape with padding (and everything past each row's length) zeroed.
    """
    if batch_first:
        B, S, D = x.shape
    else:
        S, B, D = x.shape
    assert mask.shape == (B, S), (mask.shape, (B, S))

    # Fold the pack/pad round-trip into a single per-(row, position) keep factor.
    lengths = mask.astype(jnp.int32).sum(axis=1, keepdims=True)          # (B, 1)
    t = jnp.arange(S, dtype=jnp.int32)[None, :]                          # (1, S)
    keep = (mask.astype(bool) & (t < lengths)).astype(x.dtype)           # (B, S)
    if not batch_first:
        keep = keep.T                                                    # (S, B), tiny transpose

    itemsize = jnp.dtype(x.dtype).itemsize
    cap = _vmem_capacity_bytes()
    if target_block_bytes is not None:
        target = int(target_block_bytes)
    elif cap <= (64 << 20):
        # v7x-class: fast HBM makes per-step overhead relatively expensive -> big blocks.
        target = max(1 << 20, min(12 << 20, cap // 5))
    else:
        target = max(1 << 20, min(8 << 20, cap // 12))
    TB, TS, TD = _pick_tiles(B, S, D, itemsize, target, batch_first)

    gb, gs, gd = pl.cdiv(B, TB), pl.cdiv(S, TS), pl.cdiv(D, TD)
    # Largest extent first -> v7x TensorCore grid sharding always has work to split.
    extents = {"b": gb, "s": gs, "d": gd}
    order = sorted(("b", "s", "d"), key=lambda k: -extents[k])
    pos = {k: i for i, k in enumerate(order)}
    grid = tuple(extents[k] for k in order)

    def make_map(dims, _pos=pos):
        idxs = tuple(_pos[d] for d in dims)
        return lambda *g: tuple(g[i] for i in idxs)

    if batch_first:
        x_spec = pl.BlockSpec((TB, TS, TD), make_map(("b", "s", "d")))
        k_spec = pl.BlockSpec((TB, TS), make_map(("b", "s")))
    else:
        x_spec = pl.BlockSpec((TS, TB, TD), make_map(("s", "b", "d")))
        k_spec = pl.BlockSpec((TS, TB), make_map(("s", "b")))

    # Accurate double-buffer budget (x in + o out + keep, x2 buffers) + headroom.
    blk_bytes = TB * TS * TD * itemsize
    keep_bytes = TB * TS * itemsize
    needed = 2 * (2 * blk_bytes + keep_bytes)
    vmem_limit = int(min(cap, max(32 << 20, needed + (4 << 20))))

    return pl.pallas_call(
        _squeeze_kernel,
        out_shape=jax.ShapeDtypeStruct(x.shape, x.dtype),
        grid=grid,
        in_specs=[x_spec, k_spec],
        out_specs=x_spec,
        compiler_params=pltpu.CompilerParams(
            dimension_semantics=("parallel",) * len(grid),
            vmem_limit_bytes=vmem_limit,
        ),
    )(x, keep)


# ---------------------------------------------------------------------------
# Reference + demo
# ---------------------------------------------------------------------------
def _reference(x, mask, batch_first: bool = True):
    """Plain-JAX reference of the PyTorch forward."""
    lengths = mask.astype(jnp.int32).sum(axis=1)                         # (B,)
    S = x.shape[1] if batch_first else x.shape[0]
    t = jnp.arange(S)[None, :]
    keep = ((t < lengths[:, None]) & mask.astype(bool)).astype(x.dtype)  # (B, S)
    if batch_first:
        return x * keep[:, :, None]
    return x * keep.T[:, :, None]


if __name__ == "__main__":
    key = jax.random.PRNGKey(0)
    B, S, D = 2, 8, 32

    x = jax.random.normal(key, (B, S, D), dtype=jnp.float32)

    # Right-padded boolean mask: lengths = [5, 8] (pack_padded_sequence requires
    # every length > 0 and right-padding).
    lengths = jnp.array([5, 8], dtype=jnp.int32)
    mask = jnp.arange(S)[None, :] < lengths[:, None]                     # (B, S) bool

    # batch_first=True
    out = jax.block_until_ready(squeeze_embedding(x, mask, batch_first=True))
    ref = _reference(x, mask, batch_first=True)
    assert out.shape == (B, S, D) and out.dtype == x.dtype
    assert jnp.allclose(out, ref, atol=1e-6, rtol=1e-6)

    # batch_first=False (seq-major layout, no wrapper transpose of x)
    x_sm = jnp.transpose(x, (1, 0, 2))
    out_sm = jax.block_until_ready(squeeze_embedding(x_sm, mask, batch_first=False))
    ref_sm = _reference(x_sm, mask, batch_first=False)
    assert out_sm.shape == (S, B, D)
    assert jnp.allclose(out_sm, ref_sm, atol=1e-6, rtol=1e-6)

    # Ragged / tiled path check: non-divisible B, S, D with a tiny block target so
    # TB/TS/TD tiling and partial edge blocks are actually exercised.
    B2, S2, D2 = 9, 200, 160
    x2 = jax.random.normal(jax.random.PRNGKey(1), (B2, S2, D2), dtype=jnp.float32)
    len2 = jax.random.randint(jax.random.PRNGKey(2), (B2,), 1, S2 + 1)
    mask2 = jnp.arange(S2)[None, :] < len2[:, None]
    out2 = jax.block_until_ready(
        squeeze_embedding(x2, mask2, batch_first=True, target_block_bytes=64 * 1024))
    assert jnp.allclose(out2, _reference(x2, mask2, batch_first=True), atol=1e-6, rtol=1e-6)

    print("KERNEL_OK")
</pallas_src>

<mosaic_0001>
module attributes {stable_mosaic.version = 11 : i64} {
  func.func @_squeeze_kernel(%arg0: i32, %arg1: i32, %arg2: i32, %arg3: memref<2x8x32xf32, #tpu.memory_space<vmem>>, %arg4: memref<2x8xf32, #tpu.memory_space<vmem>>, %arg5: memref<2x8x32xf32, #tpu.memory_space<vmem>>) attributes {dimension_semantics = [#tpu.dimension_semantics<parallel>, #tpu.dimension_semantics<parallel>, #tpu.dimension_semantics<parallel>], iteration_bounds = array<i64: 1, 1, 1>, scalar_prefetch = 0 : i64, scratch_operands = 0 : i64, tpu.core_type = #tpu.core_type<tc>, window_params = [{transform_indices = @transform_0, window_bounds = array<i64: 2, 8, 32>}, {transform_indices = @transform_1, window_bounds = array<i64: 2, 8>}, {transform_indices = @transform_2, window_bounds = array<i64: 2, 8, 32>}]} {
    %c0 = arith.constant 0 : index
    %c0_0 = arith.constant 0 : index
    %c0_1 = arith.constant 0 : index
    %0 = vector.load %arg3[%c0, %c0_0, %c0_1] : memref<2x8x32xf32, #tpu.memory_space<vmem>>, vector<2x8x32xf32>
    %c0_2 = arith.constant 0 : index
    %c0_3 = arith.constant 0 : index
    %1 = vector.load %arg4[%c0_2, %c0_3] : memref<2x8xf32, #tpu.memory_space<vmem>>, vector<2x8xf32>
    %2 = vector.shape_cast %1 : vector<2x8xf32> to vector<2x8x1xf32>
    %3 = vector.broadcast %2 : vector<2x8x1xf32> to vector<2x8x32xf32>
    %4 = arith.mulf %0, %3 : vector<2x8x32xf32>
    %c0_4 = arith.constant 0 : index
    %c0_5 = arith.constant 0 : index
    %c0_6 = arith.constant 0 : index
    %5 = vector.load %arg5[%c0_4, %c0_5, %c0_6] : memref<2x8x32xf32, #tpu.memory_space<vmem>>, vector<2x8x32xf32>
    tpu.vector_store %arg5[%c0_4, %c0_5, %c0_6], %4 {strides = array<i32>} : memref<2x8x32xf32, #tpu.memory_space<vmem>>, vector<2x8x32xf32>,
    return
  }
  func.func @transform_0(%arg0: i32, %arg1: i32, %arg2: i32) -> (i32, i32, i32) {
    %c0_i32 = arith.constant 0 : i32
    return %arg0, %arg1, %arg2 : i32, i32, i32
  }
  func.func @transform_1(%arg0: i32, %arg1: i32, %arg2: i32) -> (i32, i32) {
    %c0_i32 = arith.constant 0 : i32
    return %arg0, %arg1 : i32, i32
  }
  func.func @transform_2(%arg0: i32, %arg1: i32, %arg2: i32) -> (i32, i32, i32) {
    %c0_i32 = arith.constant 0 : i32
    return %arg0, %arg1, %arg2 : i32, i32, i32
  }
}

</mosaic_0001>

<llo_original>
// kernel: tpu_custom_call.1
$region0: #{tpu_custom_call.1}
  #allocation0 [shape = 'u32[]', space=smem, size = 0x4, offset = 0x4, fixed_abs, tag = 'smem constant byte address 0x4 - core index']
  #allocation1 [shape = 'u32[144,128]{1,0:T(1,128)}', space=vmem, size = 0x12000, scoped, tag = 'internal scratch']
  %s0 = inlined_call_operand.hbm [shape: f32[2,8,32], index: 0, kind: input, shape index: {}]
  %s1 = inlined_call_operand.vmem [shape: f32[2,8], index: 1, kind: input, shape index: {}]
  %s2 = inlined_call_operand.hbm [shape: f32[2,8,32], index: 2, kind: output, shape index: {}]
  %s3 = sld [smem:[#allocation0]]
  $region22: #{tpu_custom_call.1} parent=0
    _
  %s5 = ssub.s32 1, %s3
  %s6 = scalar_select 0, %s5, %s3
  $region1: #{tpu_custom_call.1} parent=0
    #allocation2 [shape = 'u8[8192]{0}', space=vmem, size = 0x2000, scoped, tag = 'input window, operand 0, single buffered']
    #allocation3 [shape = 's32[1]{0}', space=sflag, size = 0x4, scoped, tag = 'scoped memory for tpu_custom_call.1']
    #allocation4 [shape = 's32[1]{0}', space=sflag, size = 0x4, scoped, tag = 'scoped memory for tpu_custom_call.1']
    #allocation5 [shape = 'u8[8192]{0}', space=vmem, size = 0x2000, scoped, tag = 'output window, operand 0, single buffered']
    %7 = vsyncpa [#allocation3], 0
    %8 = vsyncpa [#allocation4], 0
    // Predicated region
    $region2: #{tpu_custom_call.1} parent=1 // pred_check
      _
    $region3: #{tpu_custom_call.1} parent=1 // pred_check_branch
      %10 = sbr.rel (0) target = $region5
    $region4: #{tpu_custom_call.1} parent=1 // pred_region
      %s12 = ssub.s32 256, 256
      %13 = vsyncadd [#allocation3], %s12
      %s14 = sshll.u32 [#allocation2], 4
      %s15 = int_to_ptr.vmem [resolvable:$true] %s14
      %20 = dma.hbm_to_vmem [thread:$0]  %s0, 256, %s15, [#allocation3], 128, 128, 8
    $region5: #{tpu_custom_call.1} parent=1 // pred_fallthru
      _
    // Predicated region
    $region6: #{tpu_custom_call.1} parent=1 // pred_check
      _
    $region7: #{tpu_custom_call.1} parent=1 // pred_check_branch
      %22 = sbr.rel (0) target = $region9
    $region8: #{tpu_custom_call.1} parent=1 // pred_region
      _
    $region9: #{tpu_custom_call.1} parent=1 // pred_fallthru
      _
    // Predicated region
    $region10: #{tpu_custom_call.1} parent=1 // pred_check
      _
    $region11: #{tpu_custom_call.1} parent=1 // pred_check_branch
      %24 = sbr.rel (0) target = $region13
    $region12: #{tpu_custom_call.1} parent=1 // pred_region
      %25 = dma.done [#allocation3], 256
    $region13: #{tpu_custom_call.1} parent=1 // pred_fallthru
      _
    %v26 = vld [vmem:[#allocation2] sm:$0xff]
    %v27 = vld [vmem:[#allocation2 + $0x8] sm:$0xff]
    %v28 = vld [vmem:[%s1] sm:$0x3]
    %v29 = vlaneseq
    %v30 = vshrl.u32 %v29, 7
    %v31 = vsub.s32 0, %v30
    %v32 = vrot.slane %v28, %v31
    %34 = vbcast.lane.b32.xlu0 %v32, 256
    %v35 = vpop.permute.xlu0 %34
    %v36 = vlaneseq
    %v37 = vshrl.u32 %v36, 7
    %v38 = vsub.s32 1, %v37
    %v39 = vrot.slane %v28, %v38
    %41 = vbcast.lane.b32.xlu0 %v39, 256
    %v42 = vpop.permute.xlu0 %41
    %v43 = vmul.f32 %v26, %v35
    %v44 = vmul.f32 %v27, %v42
    %vm45 = vcmask 261120
    %46 = vst.msk [vmem:[#allocation5] sm:$0xff] %vm45, %v43
    %47 = vst.msk [vmem:[#allocation5 + $0x8] sm:$0xff] %vm45, %v44
    // Predicated region
    $region14: #{tpu_custom_call.1} parent=1 // pred_check
      _
    $region15: #{tpu_custom_call.1} parent=1 // pred_check_branch
      %49 = sbr.rel (0) target = $region17
    $region16: #{tpu_custom_call.1} parent=1 // pred_region
      %s51 = ssub.s32 256, 256
      %52 = vsyncadd [#allocation4], %s51
      %s53 = sshll.u32 [#allocation5], 4
      %s54 = int_to_ptr.vmem [resolvable:$true] %s53
      %59 = dma.vmem_to_hbm [thread:$0]  %s54, 256, %s2, [#allocation4], 128, 128, 8
    $region17: #{tpu_custom_call.1} parent=1 // pred_fallthru
      _
    // Predicated region
    $region18: #{tpu_custom_call.1} parent=1 // pred_check
      _
    $region19: #{tpu_custom_call.1} parent=1 // pred_check_branch
      %61 = sbr.rel (0) target = $region21
    $region20: #{tpu_custom_call.1} parent=1 // pred_region
      %62 = dma.done [#allocation4], 256
    $region21: #{tpu_custom_call.1} parent=1 // pred_fallthru
      _
    %63 = vsyncpa [#allocation3], 1
    %64 = vsyncpa [#allocation4], 1

</llo_original>
